<compile_context>
chip_gen: v5e
topology: v5e:2x2
jax: 0.10.0
libtpu: 0.0.40
codegen_flags: <defaults>
</compile_context>

<pallas_src>
import functools
import math

import jax
import jax.numpy as jnp
from jax.experimental import pallas as pl
from jax.experimental.pallas import tpu as pltpu


def gat_attention_kernel(ne_ref, s_src_ref, s_dst_ref, adj_ref, wh_ref, o_ref,
                         *, num_heads, d_out, final_elu):
    """Masked leaky-relu softmax attention + aggregation for every head of one
    MultiHeadLayer, for one row tile of query nodes.

    ne_ref    : (H,)  SMEM   per-head non-edge logit = -9e15 * sum(attn_fc.weight)
    s_src_ref : (tq, H)      a_src . Wh[i] for this query-row tile
    s_dst_ref : (H, N)       a_dst . Wh[j] for all nodes, PRE-transposed
    adj_ref   : (tq, N) int8 adjacency rows for this tile (non-zero = edge)
    wh_ref    : (N, H*(d_out+1))  interleaved per-head [Wh_k | 1] blocks (the
                                  ones column folds the softmax row-sum into the
                                  aggregation matmul)
    o_ref     : (tq, H*d_out)     cat_k F.elu(head_k(h)) for this row tile
    """
    dw = d_out + 1
    mask = adj_ref[...] != 0                       # (tq, N), once for all heads
    s_src = s_src_ref[...]                         # (tq, H)
    s_dst = s_dst_ref[...]                         # (H, N)
    wh = wh_ref[...]                               # (N, H*(d_out+1))

    outs = []
    for k in range(num_heads):
        # Edge logits. Non-edges keep the -9e15*ones initialization, so after
        # attn_fc their logit is -9e15 * sum(attn_fc.weight) (exact PyTorch
        # semantics -- NOT -inf).  No per-head transpose: s_dst is (H, N).
        e = s_src[:, k:k + 1] + s_dst[k:k + 1, :]                  # (tq, N)
        e = jnp.where(mask, e, ne_ref[k])
        # F.leaky_relu(., negative_slope=0.2)
        e = jnp.where(e > 0.0, e, 0.2 * e)
        # F.softmax(e, dim=1) over neighbours; alpha dropout = identity.
        m = jnp.max(e, axis=1, keepdims=True)
        p = jnp.exp(e - m).astype(wh.dtype)        # bf16 MXU operand if enabled
        # p @ [Wh_k | 1] -> weighted sum AND denominator in one MXU pass.
        agg = jnp.dot(p, wh[:, k * dw:(k + 1) * dw],
                      preferred_element_type=jnp.float32)          # (tq, d_out+1)
        hk = agg[:, :d_out] * pl.reciprocal(agg[:, d_out:dw], approx=True)
        # per-head F.elu (MultiHeadLayer); min() keeps the discarded branch finite.
        hk = jnp.where(hk > 0.0, hk, jnp.exp(jnp.minimum(hk, 0.0)) - 1.0)
        outs.append(hk)

    out = outs[0] if num_heads == 1 else jnp.concatenate(outs, axis=1)  # (tq, H*d_out)
    if final_elu:  # GraphAttentionNetwork-level F.elu, fused into layer 2
        out = jnp.where(out > 0.0, out, jnp.exp(jnp.minimum(out, 0.0)) - 1.0)
    o_ref[...] = out


def multi_head_layer(h, adj_i8, W, a, *, final_elu=False, mxu_bf16=True):
    """All heads of one MultiHeadLayer, concatenated on the lane axis.

    W : (H, d_out, d_in)   per-head fc.weight
    a : (H, 2, d_out)      per-head attn_fc.weight split into (a_src, a_dst)
    returns (N, H*d_out) = cat_k F.elu(head_k(h))
    """
    num_heads, d_out, d_in = W.shape
    N = h.shape[0]
    hd = num_heads * d_out
    dw = d_out + 1
    mxu_dtype = jnp.bfloat16 if mxu_bf16 else jnp.float32

    # --- per-layer prologue: projections computed ONCE, not per row tile -----
    # (wrapper-side XLA as recommended by the perf review; the attention kernel
    #  only streams the small projected operands.)
    wt = jnp.transpose(W, (2, 0, 1)).reshape(d_in, hd)          # (d_in, H*d_out)
    wh = jnp.dot(h.astype(mxu_dtype), wt.astype(mxu_dtype),
                 preferred_element_type=jnp.float32)            # (N, H*d_out) f32
    wh_h = wh.reshape(N, num_heads, d_out)
    s_src = jnp.einsum("nhd,hd->nh", wh_h, a[:, 0, :])          # (N, H)
    s_dst_t = jnp.einsum("nhd,hd->hn", wh_h, a[:, 1, :])        # (H, N) pre-transposed
    # Interleaved [Wh_k | 1] blocks: ones column folds the softmax row-sum into
    # the aggregation matmul (MXU) instead of an XLU cross-lane reduce.
    wh_ones = jnp.concatenate(
        [wh_h, jnp.ones((N, num_heads, 1), jnp.float32)], axis=-1)
    wh_ones = wh_ones.reshape(N, num_heads * dw).astype(mxu_dtype)
    # Per-head non-edge logit, read from SMEM inside the kernel.
    ne = -9000000000000000.0 * jnp.sum(a, axis=(1, 2))          # (H,)

    # Row tile: single tile for small graphs; otherwise 128 (multiple of 32 for
    # the int8 adjacency tiling, fits v7x 64 MiB VMEM, and yields grid >= 2 so
    # both v7x TensorCores get row tiles).
    tq = N if N <= 128 else 128
    # TODO(synk): pl.cdiv grid + masked remainder for N not divisible by tq.
    assert N % tq == 0, "node count must be divisible by the row tile"
    grid = (N // tq,)

    kernel = functools.partial(gat_attention_kernel, num_heads=num_heads,
                               d_out=d_out, final_elu=final_elu)
    return pl.pallas_call(
        kernel,
        out_shape=jax.ShapeDtypeStruct((N, hd), jnp.float32),
        grid=grid,
        in_specs=[
            pl.BlockSpec(memory_space=pltpu.MemorySpace.SMEM),      # ne (H,) scalars
            pl.BlockSpec((tq, num_heads), lambda i: (i, 0)),        # s_src row tile
            pl.BlockSpec((num_heads, N), lambda i: (0, 0)),         # s_dst^T (grid-invariant)
            pl.BlockSpec((tq, N), lambda i: (i, 0)),                # adj rows (int8)
            pl.BlockSpec((N, num_heads * dw), lambda i: (0, 0)),    # [Wh_k|1] (grid-invariant)
        ],
        out_specs=pl.BlockSpec((tq, hd), lambda i: (i, 0)),
        compiler_params=pltpu.CompilerParams(
            dimension_semantics=("parallel",),     # row tiles independent -> megacore
            vmem_limit_bytes=48 * 1024 * 1024),    # explicit headroom (< v7x 64 MiB)
    )(ne, s_src, s_dst_t, adj_i8, wh_ones)


def gat_forward(h, adj_i8, params, *, mxu_bf16=True):
    """GraphAttentionNetwork.forward (eval mode: dropout = identity)."""
    W1, a1, W2, a2 = params
    # layer1: concat=True -> kernel writes the concatenated (N, H*hid) slab.
    h1 = multi_head_layer(h, adj_i8, W1, a1, final_elu=False, mxu_bf16=mxu_bf16)
    # layer2: one head, concat=False -> mean over 1 head == identity.
    # The network-level F.elu is fused into the kernel (final_elu=True).
    return multi_head_layer(h1, adj_i8, W2, a2, final_elu=True, mxu_bf16=mxu_bf16)


# ---------------------------------------------------------------------------
# Parameter init (mirrors reset_parameters: xavier_normal_, gain = relu gain)
# ---------------------------------------------------------------------------
def _xavier_normal(key, shape, gain):
    fan_out, fan_in = shape
    std = gain * math.sqrt(2.0 / (fan_in + fan_out))
    return std * jax.random.normal(key, shape, dtype=jnp.float32)


def init_params(key, in_dim, hid_dim, out_dim, num_heads):
    gain = math.sqrt(2.0)  # nn.init.calculate_gain('relu')
    keys = jax.random.split(key, 2 * num_heads + 2)
    # layer 1: num_heads heads of GraphAttentionLayer(in_dim, hid_dim)
    W1 = jnp.stack([_xavier_normal(keys[i], (hid_dim, in_dim), gain)
                    for i in range(num_heads)])                          # (H, hid, in)
    a1 = jnp.stack([_xavier_normal(keys[num_heads + i], (1, 2 * hid_dim), gain)[0]
                    for i in range(num_heads)])                          # (H, 2*hid)
    a1 = a1.reshape(num_heads, 2, hid_dim)
    # layer 2: one head of GraphAttentionLayer(hid_dim*num_heads, out_dim)
    W2 = _xavier_normal(keys[-2], (out_dim, hid_dim * num_heads), gain)[None]
    a2 = _xavier_normal(keys[-1], (1, 2 * out_dim), gain).reshape(1, 2, out_dim)
    return W1, a1, W2, a2


# ---------------------------------------------------------------------------
# Pure-JAX reference (same math, no Pallas) for a sanity cross-check.
# mxu_dtype lets the reference mirror the bf16-MXU fast path.
# ---------------------------------------------------------------------------
def _ref_head(h, adj, W, a, mxu_dtype):
    Wh = jnp.dot(h.astype(mxu_dtype), W.T.astype(mxu_dtype),
                 preferred_element_type=jnp.float32)
    edge = (Wh @ a[0])[:, None] + (Wh @ a[1])[None, :]
    scores = jnp.where(adj > 0.0, edge, -9000000000000000.0 * jnp.sum(a))
    e = jnp.where(scores > 0.0, scores, 0.2 * scores)
    alpha = jax.nn.softmax(e, axis=1)
    out = jnp.dot(alpha.astype(mxu_dtype), Wh.astype(mxu_dtype),
                  preferred_element_type=jnp.float32)
    return jnp.where(out > 0.0, out, jnp.exp(jnp.minimum(out, 0.0)) - 1.0)


def ref_forward(h, adj, params, mxu_dtype=jnp.float32):
    W1, a1, W2, a2 = params
    heads = [_ref_head(h, adj, W1[k], a1[k], mxu_dtype) for k in range(W1.shape[0])]
    h1 = jnp.concatenate(heads, axis=1)
    h2 = _ref_head(h1, adj, W2[0], a2[0], mxu_dtype)
    return jnp.where(h2 > 0.0, h2, jnp.exp(jnp.minimum(h2, 0.0)) - 1.0)


if __name__ == "__main__":
    N, in_dim, hid_dim, out_dim, num_heads = 16, 8, 8, 8, 4

    key = jax.random.PRNGKey(0)
    k_h, k_adj, k_p = jax.random.split(key, 3)

    # node features
    h = jax.random.normal(k_h, (N, in_dim), dtype=jnp.float32)

    # deterministic symmetric adjacency mask (no self loops) standing in for kg
    rand = jax.random.bernoulli(k_adj, 0.3, (N, N))
    adj_bool = jnp.logical_or(rand, rand.T)
    adj_bool = jnp.where(jnp.eye(N, dtype=bool), False, adj_bool)
    adj_i8 = adj_bool.astype(jnp.int8)          # int8 mask: 4x less HBM/VMEM than f32

    params = init_params(k_p, in_dim, hid_dim, out_dim, num_heads)

    # f32 MXU path (exact) and bf16 MXU path (v6e/v7x fast path, per perf review)
    out_f32 = jax.block_until_ready(
        jax.jit(functools.partial(gat_forward, mxu_bf16=False))(h, adj_i8, params))
    out_bf16 = jax.block_until_ready(
        jax.jit(functools.partial(gat_forward, mxu_bf16=True))(h, adj_i8, params))

    adj_f32 = adj_bool.astype(jnp.float32)
    ref_f32 = ref_forward(h, adj_f32, params, mxu_dtype=jnp.float32)
    ref_bf16 = ref_forward(h, adj_f32, params, mxu_dtype=jnp.bfloat16)

    assert out_f32.shape == (N, out_dim)
    assert out_bf16.shape == (N, out_dim)
    # f32 tolerance covers pl.reciprocal(approx=True) in the softmax normalisation.
    assert jnp.allclose(out_f32, ref_f32, rtol=5e-3, atol=5e-3), "f32 Pallas/JAX mismatch"
    # bf16 MXU fast path: validated against a bf16-matched JAX reference; the loose
    # tolerance reflects bf16 rounding (and differing rounding points) amplified
    # through two stacked softmax layers -- fidelity to the PyTorch f32 semantics
    # is established by the f32 check above.
    assert jnp.allclose(out_bf16, ref_bf16, rtol=1e-1, atol=1e-1), "bf16 Pallas/JAX mismatch"

    print("KERNEL_OK")
</pallas_src>

<mosaic_0001>
module attributes {stable_mosaic.version = 11 : i64} {
  func.func @gat_attention_kernel(%arg0: i32, %arg1: memref<4xf32, #tpu.memory_space<smem>>, %arg2: memref<16x4xf32, #tpu.memory_space<vmem>>, %arg3: memref<4x16xf32, #tpu.memory_space<vmem>>, %arg4: memref<16x16xi8, #tpu.memory_space<vmem>>, %arg5: memref<16x36xf32, #tpu.memory_space<vmem>>, %arg6: memref<16x32xf32, #tpu.memory_space<vmem>>) attributes {dimension_semantics = [#tpu.dimension_semantics<parallel>], iteration_bounds = array<i64: 1>, scalar_prefetch = 0 : i64, scratch_operands = 0 : i64, tpu.core_type = #tpu.core_type<tc>, window_params = [{transform_indices = @transform_0, window_bounds = array<i64: 4>}, {transform_indices = @transform_1, window_bounds = array<i64: 16, 4>}, {pipeline_mode = #tpu.pipeline_mode<synchronous>, transform_indices = @transform_2, window_bounds = array<i64: 4, 16>}, {transform_indices = @transform_3, window_bounds = array<i64: 16, 16>}, {pipeline_mode = #tpu.pipeline_mode<synchronous>, transform_indices = @transform_4, window_bounds = array<i64: 16, 36>}, {transform_indices = @transform_5, window_bounds = array<i64: 16, 32>}]} {
    %c0 = arith.constant 0 : index
    %c0_0 = arith.constant 0 : index
    %0 = vector.load %arg4[%c0, %c0_0] : memref<16x16xi8, #tpu.memory_space<vmem>>, vector<16x16xi8>
    %c0_i8 = arith.constant 0 : i8
    %1 = vector.broadcast %c0_i8 : i8 to vector<16x16xi8>
    %2 = arith.cmpi ne, %0, %1 : vector<16x16xi8>
    %c0_1 = arith.constant 0 : index
    %c0_2 = arith.constant 0 : index
    %3 = vector.load %arg2[%c0_1, %c0_2] : memref<16x4xf32, #tpu.memory_space<vmem>>, vector<16x4xf32>
    %c0_3 = arith.constant 0 : index
    %c0_4 = arith.constant 0 : index
    %4 = vector.load %arg3[%c0_3, %c0_4] : memref<4x16xf32, #tpu.memory_space<vmem>>, vector<4x16xf32>
    %c0_5 = arith.constant 0 : index
    %c0_6 = arith.constant 0 : index
    %5 = vector.load %arg5[%c0_5, %c0_6] : memref<16x36xf32, #tpu.memory_space<vmem>>, vector<16x36xf32>
    %6 = vector.extract_strided_slice %3 {offsets = [0, 0], sizes = [16, 1], strides = [1, 1]} : vector<16x4xf32> to vector<16x1xf32>
    %7 = vector.extract_strided_slice %4 {offsets = [0, 0], sizes = [1, 16], strides = [1, 1]} : vector<4x16xf32> to vector<1x16xf32>
    %8 = vector.broadcast %6 : vector<16x1xf32> to vector<16x16xf32>
    %9 = vector.broadcast %7 : vector<1x16xf32> to vector<16x16xf32>
    %10 = arith.addf %8, %9 : vector<16x16xf32>
    %c0_7 = arith.constant 0 : index
    %11 = memref.load %arg1[%c0_7] : memref<4xf32, #tpu.memory_space<smem>>
    %12 = vector.broadcast %11 : f32 to vector<16x16xf32>
    %13 = arith.select %2, %10, %12 : vector<16x16xi1>, vector<16x16xf32>
    %cst = arith.constant 0.000000e+00 : f32
    %14 = vector.broadcast %cst : f32 to vector<16x16xf32>
    %15 = arith.cmpf ogt, %13, %14 : vector<16x16xf32>
    %cst_8 = arith.constant 2.000000e-01 : f32
    %16 = vector.broadcast %cst_8 : f32 to vector<16x16xf32>
    %17 = arith.mulf %16, %13 : vector<16x16xf32>
    %18 = arith.select %15, %13, %17 : vector<16x16xi1>, vector<16x16xf32>
    %cst_9 = arith.constant dense<0xFF800000> : vector<16xf32>
    %19 = vector.multi_reduction <maximumf>, %18, %cst_9 [1] : vector<16x16xf32> to vector<16xf32>
    %20 = vector.shape_cast %19 : vector<16xf32> to vector<16x1xf32>
    %21 = vector.broadcast %20 : vector<16x1xf32> to vector<16x16xf32>
    %22 = arith.subf %18, %21 : vector<16x16xf32>
    %23 = math.exp %22 : vector<16x16xf32>
    %24 = vector.extract_strided_slice %5 {offsets = [0, 0], sizes = [16, 9], strides = [1, 1]} : vector<16x36xf32> to vector<16x9xf32>
    %cst_10 = arith.constant dense<0.000000e+00> : vector<16x9xf32>
    %25 = tpu.matmul %23, %24, %cst_10 {dimension_numbers = #tpu.dot_dimension_numbers<[1], [0], [0], [1], [0, 0, 1, 1], [], []>} : vector<16x16xf32>, vector<16x9xf32>, vector<16x9xf32> -> vector<16x9xf32>
    %26 = vector.extract_strided_slice %25 {offsets = [0, 0], sizes = [16, 8], strides = [1, 1]} : vector<16x9xf32> to vector<16x8xf32>
    %27 = vector.extract_strided_slice %25 {offsets = [0, 8], sizes = [16, 1], strides = [1, 1]} : vector<16x9xf32> to vector<16x1xf32>
    %28 = tpu.reciprocal %27 {approx = true} : vector<16x1xf32> -> vector<16x1xf32>
    %29 = vector.broadcast %28 : vector<16x1xf32> to vector<16x8xf32>
    %30 = arith.mulf %26, %29 : vector<16x8xf32>
    %cst_11 = arith.constant 0.000000e+00 : f32
    %31 = vector.broadcast %cst_11 : f32 to vector<16x8xf32>
    %32 = arith.cmpf ogt, %30, %31 : vector<16x8xf32>
    %cst_12 = arith.constant 0.000000e+00 : f32
    %33 = vector.broadcast %cst_12 : f32 to vector<16x8xf32>
    %34 = arith.minimumf %30, %33 : vector<16x8xf32>
    %35 = math.exp %34 : vector<16x8xf32>
    %cst_13 = arith.constant 1.000000e+00 : f32
    %36 = vector.broadcast %cst_13 : f32 to vector<16x8xf32>
    %37 = arith.subf %35, %36 : vector<16x8xf32>
    %38 = arith.select %32, %30, %37 : vector<16x8xi1>, vector<16x8xf32>
    %39 = vector.extract_strided_slice %3 {offsets = [0, 1], sizes = [16, 1], strides = [1, 1]} : vector<16x4xf32> to vector<16x1xf32>
    %40 = vector.extract_strided_slice %4 {offsets = [1, 0], sizes = [1, 16], strides = [1, 1]} : vector<4x16xf32> to vector<1x16xf32>
    %41 = vector.broadcast %39 : vector<16x1xf32> to vector<16x16xf32>
    %42 = vector.broadcast %40 : vector<1x16xf32> to vector<16x16xf32>
    %43 = arith.addf %41, %42 : vector<16x16xf32>
    %c1 = arith.constant 1 : index
    %44 = memref.load %arg1[%c1] : memref<4xf32, #tpu.memory_space<smem>>
    %45 = vector.broadcast %44 : f32 to vector<16x16xf32>
    %46 = arith.select %2, %43, %45 : vector<16x16xi1>, vector<16x16xf32>
    %cst_14 = arith.constant 0.000000e+00 : f32
    %47 = vector.broadcast %cst_14 : f32 to vector<16x16xf32>
    %48 = arith.cmpf ogt, %46, %47 : vector<16x16xf32>
    %cst_15 = arith.constant 2.000000e-01 : f32
    %49 = vector.broadcast %cst_15 : f32 to vector<16x16xf32>
    %50 = arith.mulf %49, %46 : vector<16x16xf32>
    %51 = arith.select %48, %46, %50 : vector<16x16xi1>, vector<16x16xf32>
    %cst_16 = arith.constant dense<0xFF800000> : vector<16xf32>
    %52 = vector.multi_reduction <maximumf>, %51, %cst_16 [1] : vector<16x16xf32> to vector<16xf32>
    %53 = vector.shape_cast %52 : vector<16xf32> to vector<16x1xf32>
    %54 = vector.broadcast %53 : vector<16x1xf32> to vector<16x16xf32>
    %55 = arith.subf %51, %54 : vector<16x16xf32>
    %56 = math.exp %55 : vector<16x16xf32>
    %57 = vector.extract_strided_slice %5 {offsets = [0, 9], sizes = [16, 9], strides = [1, 1]} : vector<16x36xf32> to vector<16x9xf32>
    %cst_17 = arith.constant dense<0.000000e+00> : vector<16x9xf32>
    %58 = tpu.matmul %56, %57, %cst_17 {dimension_numbers = #tpu.dot_dimension_numbers<[1], [0], [0], [1], [0, 0, 1, 1], [], []>} : vector<16x16xf32>, vector<16x9xf32>, vector<16x9xf32> -> vector<16x9xf32>
    %59 = vector.extract_strided_slice %58 {offsets = [0, 0], sizes = [16, 8], strides = [1, 1]} : vector<16x9xf32> to vector<16x8xf32>
    %60 = vector.extract_strided_slice %58 {offsets = [0, 8], sizes = [16, 1], strides = [1, 1]} : vector<16x9xf32> to vector<16x1xf32>
    %61 = tpu.reciprocal %60 {approx = true} : vector<16x1xf32> -> vector<16x1xf32>
    %62 = vector.broadcast %61 : vector<16x1xf32> to vector<16x8xf32>
    %63 = arith.mulf %59, %62 : vector<16x8xf32>
    %cst_18 = arith.constant 0.000000e+00 : f32
    %64 = vector.broadcast %cst_18 : f32 to vector<16x8xf32>
    %65 = arith.cmpf ogt, %63, %64 : vector<16x8xf32>
    %cst_19 = arith.constant 0.000000e+00 : f32
    %66 = vector.broadcast %cst_19 : f32 to vector<16x8xf32>
    %67 = arith.minimumf %63, %66 : vector<16x8xf32>
    %68 = math.exp %67 : vector<16x8xf32>
    %cst_20 = arith.constant 1.000000e+00 : f32
    %69 = vector.broadcast %cst_20 : f32 to vector<16x8xf32>
    %70 = arith.subf %68, %69 : vector<16x8xf32>
    %71 = arith.select %65, %63, %70 : vector<16x8xi1>, vector<16x8xf32>
    %72 = vector.extract_strided_slice %3 {offsets = [0, 2], sizes = [16, 1], strides = [1, 1]} : vector<16x4xf32> to vector<16x1xf32>
    %73 = vector.extract_strided_slice %4 {offsets = [2, 0], sizes = [1, 16], strides = [1, 1]} : vector<4x16xf32> to vector<1x16xf32>
    %74 = vector.broadcast %72 : vector<16x1xf32> to vector<16x16xf32>
    %75 = vector.broadcast %73 : vector<1x16xf32> to vector<16x16xf32>
    %76 = arith.addf %74, %75 : vector<16x16xf32>
    %c2 = arith.constant 2 : index
    %77 = memref.load %arg1[%c2] : memref<4xf32, #tpu.memory_space<smem>>
    %78 = vector.broadcast %77 : f32 to vector<16x16xf32>
    %79 = arith.select %2, %76, %78 : vector<16x16xi1>, vector<16x16xf32>
    %cst_21 = arith.constant 0.000000e+00 : f32
    %80 = vector.broadcast %cst_21 : f32 to vector<16x16xf32>
    %81 = arith.cmpf ogt, %79, %80 : vector<16x16xf32>
    %cst_22 = arith.constant 2.000000e-01 : f32
    %82 = vector.broadcast %cst_22 : f32 to vector<16x16xf32>
    %83 = arith.mulf %82, %79 : vector<16x16xf32>
    %84 = arith.select %81, %79, %83 : vector<16x16xi1>, vector<16x16xf32>
    %cst_23 = arith.constant dense<0xFF800000> : vector<16xf32>
    %85 = vector.multi_reduction <maximumf>, %84, %cst_23 [1] : vector<16x16xf32> to vector<16xf32>
    %86 = vector.shape_cast %85 : vector<16xf32> to vector<16x1xf32>
    %87 = vector.broadcast %86 : vector<16x1xf32> to vector<16x16xf32>
    %88 = arith.subf %84, %87 : vector<16x16xf32>
    %89 = math.exp %88 : vector<16x16xf32>
    %90 = vector.extract_strided_slice %5 {offsets = [0, 18], sizes = [16, 9], strides = [1, 1]} : vector<16x36xf32> to vector<16x9xf32>
    %cst_24 = arith.constant dense<0.000000e+00> : vector<16x9xf32>
    %91 = tpu.matmul %89, %90, %cst_24 {dimension_numbers = #tpu.dot_dimension_numbers<[1], [0], [0], [1], [0, 0, 1, 1], [], []>} : vector<16x16xf32>, vector<16x9xf32>, vector<16x9xf32> -> vector<16x9xf32>
    %92 = vector.extract_strided_slice %91 {offsets = [0, 0], sizes = [16, 8], strides = [1, 1]} : vector<16x9xf32> to vector<16x8xf32>
    %93 = vector.extract_strided_slice %91 {offsets = [0, 8], sizes = [16, 1], strides = [1, 1]} : vector<16x9xf32> to vector<16x1xf32>
    %94 = tpu.reciprocal %93 {approx = true} : vector<16x1xf32> -> vector<16x1xf32>
    %95 = vector.broadcast %94 : vector<16x1xf32> to vector<16x8xf32>
    %96 = arith.mulf %92, %95 : vector<16x8xf32>
    %cst_25 = arith.constant 0.000000e+00 : f32
    %97 = vector.broadcast %cst_25 : f32 to vector<16x8xf32>
    %98 = arith.cmpf ogt, %96, %97 : vector<16x8xf32>
    %cst_26 = arith.constant 0.000000e+00 : f32
    %99 = vector.broadcast %cst_26 : f32 to vector<16x8xf32>
    %100 = arith.minimumf %96, %99 : vector<16x8xf32>
    %101 = math.exp %100 : vector<16x8xf32>
    %cst_27 = arith.constant 1.000000e+00 : f32
    %102 = vector.broadcast %cst_27 : f32 to vector<16x8xf32>
    %103 = arith.subf %101, %102 : vector<16x8xf32>
    %104 = arith.select %98, %96, %103 : vector<16x8xi1>, vector<16x8xf32>
    %105 = vector.extract_strided_slice %3 {offsets = [0, 3], sizes = [16, 1], strides = [1, 1]} : vector<16x4xf32> to vector<16x1xf32>
    %106 = vector.extract_strided_slice %4 {offsets = [3, 0], sizes = [1, 16], strides = [1, 1]} : vector<4x16xf32> to vector<1x16xf32>
    %107 = vector.broadcast %105 : vector<16x1xf32> to vector<16x16xf32>
    %108 = vector.broadcast %106 : vector<1x16xf32> to vector<16x16xf32>
    %109 = arith.addf %107, %108 : vector<16x16xf32>
    %c3 = arith.constant 3 : index
    %110 = memref.load %arg1[%c3] : memref<4xf32, #tpu.memory_space<smem>>
    %111 = vector.broadcast %110 : f32 to vector<16x16xf32>
    %112 = arith.select %2, %109, %111 : vector<16x16xi1>, vector<16x16xf32>
    %cst_28 = arith.constant 0.000000e+00 : f32
    %113 = vector.broadcast %cst_28 : f32 to vector<16x16xf32>
    %114 = arith.cmpf ogt, %112, %113 : vector<16x16xf32>
    %cst_29 = arith.constant 2.000000e-01 : f32
    %115 = vector.broadcast %cst_29 : f32 to vector<16x16xf32>
    %116 = arith.mulf %115, %112 : vector<16x16xf32>
    %117 = arith.select %114, %112, %116 : vector<16x16xi1>, vector<16x16xf32>
    %cst_30 = arith.constant dense<0xFF800000> : vector<16xf32>
    %118 = vector.multi_reduction <maximumf>, %117, %cst_30 [1] : vector<16x16xf32> to vector<16xf32>
    %119 = vector.shape_cast %118 : vector<16xf32> to vector<16x1xf32>
    %120 = vector.broadcast %119 : vector<16x1xf32> to vector<16x16xf32>
    %121 = arith.subf %117, %120 : vector<16x16xf32>
    %122 = math.exp %121 : vector<16x16xf32>
    %123 = vector.extract_strided_slice %5 {offsets = [0, 27], sizes = [16, 9], strides = [1, 1]} : vector<16x36xf32> to vector<16x9xf32>
    %cst_31 = arith.constant dense<0.000000e+00> : vector<16x9xf32>
    %124 = tpu.matmul %122, %123, %cst_31 {dimension_numbers = #tpu.dot_dimension_numbers<[1], [0], [0], [1], [0, 0, 1, 1], [], []>} : vector<16x16xf32>, vector<16x9xf32>, vector<16x9xf32> -> vector<16x9xf32>
    %125 = vector.extract_strided_slice %124 {offsets = [0, 0], sizes = [16, 8], strides = [1, 1]} : vector<16x9xf32> to vector<16x8xf32>
    %126 = vector.extract_strided_slice %124 {offsets = [0, 8], sizes = [16, 1], strides = [1, 1]} : vector<16x9xf32> to vector<16x1xf32>
    %127 = tpu.reciprocal %126 {approx = true} : vector<16x1xf32> -> vector<16x1xf32>
    %128 = vector.broadcast %127 : vector<16x1xf32> to vector<16x8xf32>
    %129 = arith.mulf %125, %128 : vector<16x8xf32>
    %cst_32 = arith.constant 0.000000e+00 : f32
    %130 = vector.broadcast %cst_32 : f32 to vector<16x8xf32>
    %131 = arith.cmpf ogt, %129, %130 : vector<16x8xf32>
    %cst_33 = arith.constant 0.000000e+00 : f32
    %132 = vector.broadcast %cst_33 : f32 to vector<16x8xf32>
    %133 = arith.minimumf %129, %132 : vector<16x8xf32>
    %134 = math.exp %133 : vector<16x8xf32>
    %cst_34 = arith.constant 1.000000e+00 : f32
    %135 = vector.broadcast %cst_34 : f32 to vector<16x8xf32>
    %136 = arith.subf %134, %135 : vector<16x8xf32>
    %137 = arith.select %131, %129, %136 : vector<16x8xi1>, vector<16x8xf32>
    %138 = tpu.concatenate %38, %71, %104, %137 in 1 : vector<16x8xf32>, vector<16x8xf32>, vector<16x8xf32>, vector<16x8xf32> -> vector<16x32xf32>
    %c0_35 = arith.constant 0 : index
    %c0_36 = arith.constant 0 : index
    %139 = vector.load %arg6[%c0_35, %c0_36] : memref<16x32xf32, #tpu.memory_space<vmem>>, vector<16x32xf32>
    tpu.vector_store %arg6[%c0_35, %c0_36], %138 {strides = array<i32>} : memref<16x32xf32, #tpu.memory_space<vmem>>, vector<16x32xf32>,
    return
  }
  func.func @transform_0(%arg0: i32) -> i32 {
    %c0_i32 = arith.constant 0 : i32
    %c0_i32_0 = arith.constant 0 : i32
    return %c0_i32 : i32
  }
  func.func @transform_1(%arg0: i32) -> (i32, i32) {
    %c0_i32 = arith.constant 0 : i32
    %c0_i32_0 = arith.constant 0 : i32
    return %arg0, %c0_i32 : i32, i32
  }
  func.func @transform_2(%arg0: i32) -> (i32, i32) {
    %c0_i32 = arith.constant 0 : i32
    %c0_i32_0 = arith.constant 0 : i32
    %c0_i32_1 = arith.constant 0 : i32
    return %c0_i32, %c0_i32_0 : i32, i32
  }
  func.func @transform_3(%arg0: i32) -> (i32, i32) {
    %c0_i32 = arith.constant 0 : i32
    %c0_i32_0 = arith.constant 0 : i32
    return %arg0, %c0_i32 : i32, i32
  }
  func.func @transform_4(%arg0: i32) -> (i32, i32) {
    %c0_i32 = arith.constant 0 : i32
    %c0_i32_0 = arith.constant 0 : i32
    %c0_i32_1 = arith.constant 0 : i32
    return %c0_i32, %c0_i32_0 : i32, i32
  }
  func.func @transform_5(%arg0: i32) -> (i32, i32) {
    %c0_i32 = arith.constant 0 : i32
    %c0_i32_0 = arith.constant 0 : i32
    return %arg0, %c0_i32 : i32, i32
  }
}

module attributes {stable_mosaic.version = 11 : i64} {
  func.func @gat_attention_kernel(%arg0: i32, %arg1: memref<1xf32, #tpu.memory_space<smem>>, %arg2: memref<16x1xf32, #tpu.memory_space<vmem>>, %arg3: memref<1x16xf32, #tpu.memory_space<vmem>>, %arg4: memref<16x16xi8, #tpu.memory_space<vmem>>, %arg5: memref<16x9xf32, #tpu.memory_space<vmem>>, %arg6: memref<16x8xf32, #tpu.memory_space<vmem>>) attributes {dimension_semantics = [#tpu.dimension_semantics<parallel>], iteration_bounds = array<i64: 1>, scalar_prefetch = 0 : i64, scratch_operands = 0 : i64, tpu.core_type = #tpu.core_type<tc>, window_params = [{transform_indices = @transform_0, window_bounds = array<i64: 1>}, {transform_indices = @transform_1, window_bounds = array<i64: 16, 1>}, {pipeline_mode = #tpu.pipeline_mode<synchronous>, transform_indices = @transform_2, window_bounds = array<i64: 1, 16>}, {transform_indices = @transform_3, window_bounds = array<i64: 16, 16>}, {pipeline_mode = #tpu.pipeline_mode<synchronous>, transform_indices = @transform_4, window_bounds = array<i64: 16, 9>}, {transform_indices = @transform_5, window_bounds = array<i64: 16, 8>}]} {
    %c0 = arith.constant 0 : index
    %c0_0 = arith.constant 0 : index
    %0 = vector.load %arg4[%c0, %c0_0] : memref<16x16xi8, #tpu.memory_space<vmem>>, vector<16x16xi8>
    %c0_i8 = arith.constant 0 : i8
    %1 = vector.broadcast %c0_i8 : i8 to vector<16x16xi8>
    %2 = arith.cmpi ne, %0, %1 : vector<16x16xi8>
    %c0_1 = arith.constant 0 : index
    %c0_2 = arith.constant 0 : index
    %3 = vector.load %arg2[%c0_1, %c0_2] : memref<16x1xf32, #tpu.memory_space<vmem>>, vector<16x1xf32>
    %c0_3 = arith.constant 0 : index
    %c0_4 = arith.constant 0 : index
    %4 = vector.load %arg3[%c0_3, %c0_4] : memref<1x16xf32, #tpu.memory_space<vmem>>, vector<1x16xf32>
    %c0_5 = arith.constant 0 : index
    %c0_6 = arith.constant 0 : index
    %5 = vector.load %arg5[%c0_5, %c0_6] : memref<16x9xf32, #tpu.memory_space<vmem>>, vector<16x9xf32>
    %6 = vector.broadcast %3 : vector<16x1xf32> to vector<16x16xf32>
    %7 = vector.broadcast %4 : vector<1x16xf32> to vector<16x16xf32>
    %8 = arith.addf %6, %7 : vector<16x16xf32>
    %c0_7 = arith.constant 0 : index
    %9 = memref.load %arg1[%c0_7] : memref<1xf32, #tpu.memory_space<smem>>
    %10 = vector.broadcast %9 : f32 to vector<16x16xf32>
    %11 = arith.select %2, %8, %10 : vector<16x16xi1>, vector<16x16xf32>
    %cst = arith.constant 0.000000e+00 : f32
    %12 = vector.broadcast %cst : f32 to vector<16x16xf32>
    %13 = arith.cmpf ogt, %11, %12 : vector<16x16xf32>
    %cst_8 = arith.constant 2.000000e-01 : f32
    %14 = vector.broadcast %cst_8 : f32 to vector<16x16xf32>
    %15 = arith.mulf %14, %11 : vector<16x16xf32>
    %16 = arith.select %13, %11, %15 : vector<16x16xi1>, vector<16x16xf32>
    %cst_9 = arith.constant dense<0xFF800000> : vector<16xf32>
    %17 = vector.multi_reduction <maximumf>, %16, %cst_9 [1] : vector<16x16xf32> to vector<16xf32>
    %18 = vector.shape_cast %17 : vector<16xf32> to vector<16x1xf32>
    %19 = vector.broadcast %18 : vector<16x1xf32> to vector<16x16xf32>
    %20 = arith.subf %16, %19 : vector<16x16xf32>
    %21 = math.exp %20 : vector<16x16xf32>
    %cst_10 = arith.constant dense<0.000000e+00> : vector<16x9xf32>
    %22 = tpu.matmul %21, %5, %cst_10 {dimension_numbers = #tpu.dot_dimension_numbers<[1], [0], [0], [1], [0, 0, 1, 1], [], []>} : vector<16x16xf32>, vector<16x9xf32>, vector<16x9xf32> -> vector<16x9xf32>
    %23 = vector.extract_strided_slice %22 {offsets = [0, 0], sizes = [16, 8], strides = [1, 1]} : vector<16x9xf32> to vector<16x8xf32>
    %24 = vector.extract_strided_slice %22 {offsets = [0, 8], sizes = [16, 1], strides = [1, 1]} : vector<16x9xf32> to vector<16x1xf32>
    %25 = tpu.reciprocal %24 {approx = true} : vector<16x1xf32> -> vector<16x1xf32>
    %26 = vector.broadcast %25 : vector<16x1xf32> to vector<16x8xf32>
    %27 = arith.mulf %23, %26 : vector<16x8xf32>
    %cst_11 = arith.constant 0.000000e+00 : f32
    %28 = vector.broadcast %cst_11 : f32 to vector<16x8xf32>
    %29 = arith.cmpf ogt, %27, %28 : vector<16x8xf32>
    %cst_12 = arith.constant 0.000000e+00 : f32
    %30 = vector.broadcast %cst_12 : f32 to vector<16x8xf32>
    %31 = arith.minimumf %27, %30 : vector<16x8xf32>
    %32 = math.exp %31 : vector<16x8xf32>
    %cst_13 = arith.constant 1.000000e+00 : f32
    %33 = vector.broadcast %cst_13 : f32 to vector<16x8xf32>
    %34 = arith.subf %32, %33 : vector<16x8xf32>
    %35 = arith.select %29, %27, %34 : vector<16x8xi1>, vector<16x8xf32>
    %cst_14 = arith.constant 0.000000e+00 : f32
    %36 = vector.broadcast %cst_14 : f32 to vector<16x8xf32>
    %37 = arith.cmpf ogt, %35, %36 : vector<16x8xf32>
    %cst_15 = arith.constant 0.000000e+00 : f32
    %38 = vector.broadcast %cst_15 : f32 to vector<16x8xf32>
    %39 = arith.minimumf %35, %38 : vector<16x8xf32>
    %40 = math.exp %39 : vector<16x8xf32>
    %cst_16 = arith.constant 1.000000e+00 : f32
    %41 = vector.broadcast %cst_16 : f32 to vector<16x8xf32>
    %42 = arith.subf %40, %41 : vector<16x8xf32>
    %43 = arith.select %37, %35, %42 : vector<16x8xi1>, vector<16x8xf32>
    %c0_17 = arith.constant 0 : index
    %c0_18 = arith.constant 0 : index
    %44 = vector.load %arg6[%c0_17, %c0_18] : memref<16x8xf32, #tpu.memory_space<vmem>>, vector<16x8xf32>
    tpu.vector_store %arg6[%c0_17, %c0_18], %43 {strides = array<i32>} : memref<16x8xf32, #tpu.memory_space<vmem>>, vector<16x8xf32>,
    return
  }
  func.func @transform_0(%arg0: i32) -> i32 {
    %c0_i32 = arith.constant 0 : i32
    %c0_i32_0 = arith.constant 0 : i32
    return %c0_i32 : i32
  }
  func.func @transform_1(%arg0: i32) -> (i32, i32) {
    %c0_i32 = arith.constant 0 : i32
    %c0_i32_0 = arith.constant 0 : i32
    return %arg0, %c0_i32 : i32, i32
  }
  func.func @transform_2(%arg0: i32) -> (i32, i32) {
    %c0_i32 = arith.constant 0 : i32
    %c0_i32_0 = arith.constant 0 : i32
    %c0_i32_1 = arith.constant 0 : i32
    return %c0_i32, %c0_i32_0 : i32, i32
  }
  func.func @transform_3(%arg0: i32) -> (i32, i32) {
    %c0_i32 = arith.constant 0 : i32
    %c0_i32_0 = arith.constant 0 : i32
    return %arg0, %c0_i32 : i32, i32
  }
  func.func @transform_4(%arg0: i32) -> (i32, i32) {
    %c0_i32 = arith.constant 0 : i32
    %c0_i32_0 = arith.constant 0 : i32
    %c0_i32_1 = arith.constant 0 : i32
    return %c0_i32, %c0_i32_0 : i32, i32
  }
  func.func @transform_5(%arg0: i32) -> (i32, i32) {
    %c0_i32 = arith.constant 0 : i32
    %c0_i32_0 = arith.constant 0 : i32
    return %arg0, %c0_i32 : i32, i32
  }
}

</mosaic_0001>

<llo_original>
// kernel: gat_forward.3
$region0: #{gat_forward.3}
  #allocation0 [shape = 'u32[]', space=smem, size = 0x4, offset = 0x4, fixed_abs, tag = 'smem constant byte address 0x4 - core index']
  #allocation1 [shape = 'u32[72,128]{1,0:T(1,128)}', space=vmem, size = 0x9000, scoped, tag = 'internal scratch']
  #allocation2 [shape = 'f32[1]{0:T(128)S(6)}', space=smem, size = 0x200, scoped, tag = 'scoped memory for gat_forward.3']
  %s0 = inlined_call_operand.<no memory space> [shape: f32[1], index: 0, kind: input, shape index: {}]
  %s1 = inlined_call_operand.vmem [shape: f32[16,1], index: 1, kind: input, shape index: {}]
  %s2 = inlined_call_operand.vmem [shape: f32[1,16], index: 2, kind: input, shape index: {}]
  %s3 = inlined_call_operand.vmem [shape: s8[16,16], index: 3, kind: input, shape index: {}]
  %s4 = inlined_call_operand.vmem [shape: f32[16,9], index: 4, kind: input, shape index: {}]
  %s5 = inlined_call_operand.vmem [shape: f32[16,8], index: 5, kind: output, shape index: {}]
  %s6 = sld [smem:[#allocation0]]
  $region30: #{gat_forward.3} parent=0
    _
  %s8 = ssub.s32 1, %s6
  %s9 = scalar_select 0, %s8, %s6
  %10 = sst [smem:[#allocation2]] %s0
  // Predicated region
  $region2: #{gat_forward.3} parent=0 // pred_check
    _
  $region3: #{gat_forward.3} parent=0 // pred_check_branch
    %12 = sbr.rel (0) target = $region5
  $region4: #{gat_forward.3} parent=0 // pred_region
    _
  $region5: #{gat_forward.3} parent=0 // pred_fallthru
    _
  // Predicated region
  $region6: #{gat_forward.3} parent=0 // pred_check
    _
  $region7: #{gat_forward.3} parent=0 // pred_check_branch
    %14 = sbr.rel (0) target = $region9
  $region8: #{gat_forward.3} parent=0 // pred_region
    _
  $region9: #{gat_forward.3} parent=0 // pred_fallthru
    _
  // Predicated region
  $region10: #{gat_forward.3} parent=0 // pred_check
    _
  $region11: #{gat_forward.3} parent=0 // pred_check_branch
    %16 = sbr.rel (0) target = $region13
  $region12: #{gat_forward.3} parent=0 // pred_region
    _
  $region13: #{gat_forward.3} parent=0 // pred_fallthru
    _
  // Predicated region
  $region14: #{gat_forward.3} parent=0 // pred_check
    _
  $region15: #{gat_forward.3} parent=0 // pred_check_branch
    %18 = sbr.rel (0) target = $region17
  $region16: #{gat_forward.3} parent=0 // pred_region
    _
  $region17: #{gat_forward.3} parent=0 // pred_fallthru
    _
  // Predicated region
  $region18: #{gat_forward.3} parent=0 // pred_check
    _
  $region19: #{gat_forward.3} parent=0 // pred_check_branch
    %20 = sbr.rel (0) target = $region21
  $region20: #{gat_forward.3} parent=0 // pred_region
    _
  $region21: #{gat_forward.3} parent=0 // pred_fallthru
    _
  %v23 = vld [vmem:[%s3] sm:$0x3]
  %v24 = vld [vmem:[%s3 + $0x2] sm:$0x3]
  %vm25 = vnez %v23
  %vm26 = vnez %v24
  %v27 = vld [vmem:[%s1] sm:$0xff]
  %v28 = vld [vmem:[%s1 + $0x8] sm:$0xff]
  %v29 = vld [vmem:[%s2] sm:$0x1]
  %v30 = vld [vmem:[%s4] sm:$0xff]
  %v31 = vld [vmem:[%s4 + $0x8] sm:$0xff]
  %33 = vset.pattern.permute.xlu0 0
  %34 = vperm.xlu0 %33, %v27
  %v35 = vpop.permute.xlu0 %34
  %38 = vset.pattern.permute.xlu0 0
  %39 = vperm.xlu0 %38, %v28
  %v40 = vpop.permute.xlu0 %39
  %v43 = vperm.slane %v29, 0
  %v45 = vadd.f32 %v35, %v43
  %v46 = vadd.f32 %v40, %v43
  %s47 = sld [smem:[#allocation2]]
  %v48 = vstv %s47
  %v49 = vsel %vm25, 16843009, 0
  %v50 = vsel %vm26, 16843009, 0
  %v51 = vunpack.c.0.s8 %v49
  %v52 = vunpack.c.0.s8 %v50
  %vm53 = vcmp.ne.s32.totalorder %v51, 0
  %vm54 = vcmp.ne.s32.totalorder %v52, 0
  %v55 = vsel %vm53, %v45, %v48
  %v56 = vsel %vm54, %v46, %v48
  %vm57 = vcmp.gt.f32.partialorder %v55, 0.0
  %vm58 = vcmp.gt.f32.partialorder %v56, 0.0
  %v59 = vmul.f32 %v55, 0.2
  %v60 = vmul.f32 %v56, 0.2
  %v61 = vsel %vm57, %v55, %v59
  %v62 = vsel %vm58, %v56, %v60
  %vm63 = vcmask 130048
  %v64 = vsel %vm63, %v61, -inf
  %65 = vmax.xlane.f32.xlu0 %v64
  %v66 = vpop.xlane.xlu0 %65
  %v67 = vsel %vm63, %v62, -inf
  %68 = vmax.xlane.f32.xlu0 %v67
  %v69 = vpop.xlane.xlu0 %68
  %v70 = vsub.f32 %v61, %v66
  %v71 = vsub.f32 %v62, %v69
  %v72 = vmul.f32 %v70, 1.442695
  %v73 = vpow.pop %v72
  %v74 = vmul.f32 %v71, 1.442695
  %v75 = vpow.pop %v74
  %v77 = vsel %vm63, %v73, 0
  %v80 = vsel %vm63, %v75, 0
  %82 = vmatpush.msra.mxu0 0.0
  %83 = vmatpush.msra.mxu0 0.0
  %84 = vmatpush.msra.mxu0 0.0
  %85 = vmatpush.msra.mxu0 0.0
  %86 = vmatpush.msra.mxu0 0.0
  %87 = vmatpush.msra.mxu0 0.0
  %88 = vmatpush.msra.mxu0 0.0
  %89 = vmatpush.msra.mxu0 0.0
  %90 = vmatpush.msra.mxu0 0.0
  %91 = vmatpush.msra.mxu0 0.0
  %92 = vmatpush.msra.mxu0 0.0
  %93 = vmatpush.msra.mxu0 0.0
  %94 = vmatpush.msra.mxu0 0.0
  %95 = vmatpush.msra.mxu0 0.0
  %96 = vmatpush.msra.mxu0 %v31
  %97 = vmatpush.msra.mxu0 %v30
  %98 = vmatmul.f32.gmra.mxu0 %v77
  %v99 = vpop.f32.mrf.mxu0
  %v100 = vadd.f32 0.0, %v99
  %101 = vmatmul.f32.gmra.mxu0 %v80
  %v102 = vpop.f32.mrf.mxu0
  %v103 = vadd.f32 0.0, %v102
  %104 = vdwg.mxu0
  %v105 = vrcp.pop %v100
  %v106 = vrcp.pop %v103
  %108 = vset.pattern.permute.xlu0 8
  %109 = vperm.xlu0 %108, %v105
  %v110 = vpop.permute.xlu0 %109
  %113 = vset.pattern.permute.xlu0 8
  %114 = vperm.xlu0 %113, %v106
  %v115 = vpop.permute.xlu0 %114
  %v117 = vmul.f32 %v100, %v110
  %v118 = vmul.f32 %v103, %v115
  %vm119 = vcmp.gt.f32.partialorder %v117, 0.0
  %vm120 = vcmp.gt.f32.partialorder %v118, 0.0
  %v121 = vmin.f32 %v117, 0.0
  %v122 = vmin.f32 %v118, 0.0
  %v123 = vmul.f32 %v121, 1.442695
  %v124 = vpow.pop %v123
  %v125 = vmul.f32 %v122, 1.442695
  %v126 = vpow.pop %v125
  %v127 = vsub.f32 %v124, 1.0
  %v128 = vsub.f32 %v126, 1.0
  %v129 = vsel %vm119, %v117, %v127
  %v130 = vsel %vm120, %v118, %v128
  %vm131 = vcmp.gt.f32.partialorder %v129, 0.0
  %vm132 = vcmp.gt.f32.partialorder %v130, 0.0
  %v133 = vmin.f32 %v129, 0.0
  %v134 = vmin.f32 %v130, 0.0
  %v135 = vmul.f32 %v133, 1.442695
  %v136 = vpow.pop %v135
  %v137 = vmul.f32 %v134, 1.442695
  %v138 = vpow.pop %v137
  %v139 = vsub.f32 %v136, 1.0
  %v140 = vsub.f32 %v138, 1.0
  %v141 = vsel %vm131, %v129, %v139
  %v142 = vsel %vm132, %v130, %v140
  %vm143 = vcmask 64512
  %144 = vst.msk [vmem:[%s5] sm:$0xff] %vm143, %v141
  %145 = vst.msk [vmem:[%s5 + $0x8] sm:$0xff] %vm143, %v142
  // Predicated region
  $region22: #{gat_forward.3} parent=0 // pred_check
    _
  $region23: #{gat_forward.3} parent=0 // pred_check_branch
    %147 = sbr.rel (0) target = $region25
  $region24: #{gat_forward.3} parent=0 // pred_region
    _
  $region25: #{gat_forward.3} parent=0 // pred_fallthru
    _
  // Predicated region
  $region26: #{gat_forward.3} parent=0 // pred_check
    _
  $region27: #{gat_forward.3} parent=0 // pred_check_branch
    %149 = sbr.rel (0) target = $region29
  $region28: #{gat_forward.3} parent=0 // pred_region
    _
  $region29: #{gat_forward.3} parent=0 // pred_fallthru
    _

// kernel: gat_forward.2
$region0: #{gat_forward.2}
  #allocation0 [shape = 'u32[]', space=smem, size = 0x4, offset = 0x4, fixed_abs, tag = 'smem constant byte address 0x4 - core index']
  #allocation1 [shape = 'u32[72,128]{1,0:T(1,128)}', space=vmem, size = 0x9000, scoped, tag = 'internal scratch']
  %s0 = inlined_call_operand.vmem [shape: f32[4], index: 0, kind: input, shape index: {}]
  %s1 = inlined_call_operand.vmem [shape: f32[16,4], index: 1, kind: input, shape index: {}]
  %s2 = inlined_call_operand.vmem [shape: f32[4,16], index: 2, kind: input, shape index: {}]
  %s3 = inlined_call_operand.vmem [shape: s8[16,16], index: 3, kind: input, shape index: {}]
  %s4 = inlined_call_operand.vmem [shape: f32[16,36], index: 4, kind: input, shape index: {}]
  %s5 = inlined_call_operand.vmem [shape: f32[16,32], index: 5, kind: output, shape index: {}]
  %s6 = sld [smem:[#allocation0]]
  $region34: #{gat_forward.2} parent=0
    _
  %s8 = ssub.s32 1, %s6
  %s9 = scalar_select 0, %s8, %s6
  $region1: #{gat_forward.2} parent=0
    #allocation2 [shape = 'u8[512]{0}', space=smem, size = 0x200, scoped, tag = 'input window, operand 0, single buffered']
    #allocation3 [shape = 's32[1]{0}', space=sflag, size = 0x4, scoped, tag = 'scoped memory for gat_forward.2']
    %10 = vsyncpa [#allocation3], 0
    // Predicated region
    $region2: #{gat_forward.2} parent=1 // pred_check
      _
    $region3: #{gat_forward.2} parent=1 // pred_check_branch
      %12 = sbr.rel (0) target = $region5
    $region4: #{gat_forward.2} parent=1 // pred_region
      %14 = vsyncadd [#allocation3], 0
      %s16 = sshll.u32 %s0, 4
      %s17 = int_to_ptr.vmem [resolvable:$true] %s16
      %19 = dma.vmem_to_smem %s17, 16, [#allocation2], [#allocation3]
    $region5: #{gat_forward.2} parent=1 // pred_fallthru
      _
    // Predicated region
    $region6: #{gat_forward.2} parent=1 // pred_check
      _
    $region7: #{gat_forward.2} parent=1 // pred_check_branch
      %21 = sbr.rel (0) target = $region9
    $region8: #{gat_forward.2} parent=1 // pred_region
      _
    $region9: #{gat_forward.2} parent=1 // pred_fallthru
      _
    // Predicated region
    $region10: #{gat_forward.2} parent=1 // pred_check
      _
    $region11: #{gat_forward.2} parent=1 // pred_check_branch
      %23 = sbr.rel (0) target = $region13
    $region12: #{gat_forward.2} parent=1 // pred_region
      _
    $region13: #{gat_forward.2} parent=1 // pred_fallthru
      _
    // Predicated region
    $region14: #{gat_forward.2} parent=1 // pred_check
      _
    $region15: #{gat_forward.2} parent=1 // pred_check_branch
      %25 = sbr.rel (0) target = $region17
    $region16: #{gat_forward.2} parent=1 // pred_region
      _
    $region17: #{gat_forward.2} parent=1 // pred_fallthru
      _
    // Predicated region
    $region18: #{gat_forward.2} parent=1 // pred_check
      _
    $region19: #{gat_forward.2} parent=1 // pred_check_branch
      %27 = sbr.rel (0) target = $region21
    $region20: #{gat_forward.2} parent=1 // pred_region
      _
    $region21: #{gat_forward.2} parent=1 // pred_fallthru
      _
    // Predicated region
    $region22: #{gat_forward.2} parent=1 // pred_check
      _
    $region23: #{gat_forward.2} parent=1 // pred_check_branch
      %29 = sbr.rel (0) target = $region25
    $region24: #{gat_forward.2} parent=1 // pred_region
      %31 = dma.done [#allocation3], 16
    $region25: #{gat_forward.2} parent=1 // pred_fallthru
      _
    %32 = sfence
    %v35 = vld [vmem:[%s3] sm:$0x3]
    %v36 = vld [vmem:[%s3 + $0x2] sm:$0x3]
    %vm37 = vnez %v35
    %vm38 = vnez %v36
    %v39 = vld [vmem:[%s1] sm:$0xff]
    %v40 = vld [vmem:[%s1 + $0x8] sm:$0xff]
    %v41 = vld [vmem:[%s2] sm:$0xf]
    %v42 = vld [vmem:[%s4] sm:$0xff]
    %v43 = vld [vmem:[%s4 + $0x8] sm:$0xff]
    %45 = vset.pattern.permute.xlu0 0
    %46 = vperm.xlu0 %45, %v39
    %v47 = vpop.permute.xlu0 %46
    %50 = vset.pattern.permute.xlu0 0
    %51 = vperm.xlu0 %50, %v40
    %v52 = vpop.permute.xlu0 %51
    %v54 = vperm.slane %v41, 0
    %v55 = vadd.f32 %v47, %v54
    %v56 = vadd.f32 %v52, %v54
    %s57 = sld [smem:[#allocation2]]
    %v58 = vstv %s57
    %v59 = vsel %vm37, 16843009, 0
    %v60 = vsel %vm38, 16843009, 0
    %v61 = vunpack.c.0.s8 %v59
    %v62 = vunpack.c.0.s8 %v60
    %vm63 = vcmp.ne.s32.totalorder %v61, 0
    %vm64 = vcmp.ne.s32.totalorder %v62, 0
    %v65 = vsel %vm63, %v55, %v58
    %v66 = vsel %vm64, %v56, %v58
    %vm67 = vcmp.gt.f32.partialorder %v65, 0.0
    %vm68 = vcmp.gt.f32.partialorder %v66, 0.0
    %v69 = vmul.f32 %v65, 0.2
    %v70 = vmul.f32 %v66, 0.2
    %v71 = vsel %vm67, %v65, %v69
    %v72 = vsel %vm68, %v66, %v70
    %vm73 = vcmask 130048
    %v74 = vsel %vm73, %v71, -inf
    %75 = vmax.xlane.f32.xlu0 %v74
    %v76 = vpop.xlane.xlu0 %75
    %v77 = vsel %vm73, %v72, -inf
    %78 = vmax.xlane.f32.xlu0 %v77
    %v79 = vpop.xlane.xlu0 %78
    %v80 = vsub.f32 %v71, %v76
    %v81 = vsub.f32 %v72, %v79
    %v82 = vmul.f32 %v80, 1.442695
    %v83 = vpow.pop %v82
    %v84 = vmul.f32 %v81, 1.442695
    %v85 = vpow.pop %v84
    %v87 = vsel %vm73, %v83, 0
    %v90 = vsel %vm73, %v85, 0
    %92 = vmatpush.msra.mxu0 0.0
    %93 = vmatpush.msra.mxu0 0.0
    %94 = vmatpush.msra.mxu0 0.0
    %95 = vmatpush.msra.mxu0 0.0
    %96 = vmatpush.msra.mxu0 0.0
    %97 = vmatpush.msra.mxu0 0.0
    %98 = vmatpush.msra.mxu0 0.0
    %99 = vmatpush.msra.mxu0 0.0
    %100 = vmatpush.msra.mxu0 0.0
    %101 = vmatpush.msra.mxu0 0.0
    %102 = vmatpush.msra.mxu0 0.0
    %103 = vmatpush.msra.mxu0 0.0
    %104 = vmatpush.msra.mxu0 0.0
    %105 = vmatpush.msra.mxu0 0.0
    %106 = vmatpush.msra.mxu0 %v43
    %107 = vmatpush.msra.mxu0 %v42
    %108 = vmatmul.f32.gmra.mxu0 %v87
    %v109 = vpop.f32.mrf.mxu0
    %v110 = vadd.f32 0.0, %v109
    %111 = vmatmul.f32.gmra.mxu0 %v90
    %v112 = vpop.f32.mrf.mxu0
    %v113 = vadd.f32 0.0, %v112
    %114 = vdwg.mxu0
    %v115 = vrcp.pop %v110
    %v116 = vrcp.pop %v113
    %118 = vset.pattern.permute.xlu0 8
    %119 = vperm.xlu0 %118, %v115
    %v120 = vpop.permute.xlu0 %119
    %123 = vset.pattern.permute.xlu0 8
    %124 = vperm.xlu0 %123, %v116
    %v125 = vpop.permute.xlu0 %124
    %v127 = vmul.f32 %v110, %v120
    %v128 = vmul.f32 %v113, %v125
    %vm129 = vcmp.gt.f32.partialorder %v127, 0.0
    %vm130 = vcmp.gt.f32.partialorder %v128, 0.0
    %v131 = vmin.f32 %v127, 0.0
    %v132 = vmin.f32 %v128, 0.0
    %v133 = vmul.f32 %v131, 1.442695
    %v134 = vpow.pop %v133
    %v135 = vmul.f32 %v132, 1.442695
    %v136 = vpow.pop %v135
    %v137 = vsub.f32 %v134, 1.0
    %v138 = vsub.f32 %v136, 1.0
    %v139 = vsel %vm129, %v127, %v137
    %v140 = vsel %vm130, %v128, %v138
    %141 = vset.pattern.permute.xlu0 1
    %142 = vperm.xlu0 %141, %v39
    %v143 = vpop.permute.xlu0 %142
    %145 = vset.pattern.permute.xlu0 1
    %146 = vperm.xlu0 %145, %v40
    %v147 = vpop.permute.xlu0 %146
    %v149 = vperm.slane %v41, 1
    %v150 = vadd.f32 %v143, %v149
    %v151 = vadd.f32 %v147, %v149
    %s152 = sld [smem:[#allocation2 + $0x1]]
    %v153 = vstv %s152
    %v154 = vsel %vm63, %v150, %v153
    %v155 = vsel %vm64, %v151, %v153
    %vm156 = vcmp.gt.f32.partialorder %v154, 0.0
    %vm157 = vcmp.gt.f32.partialorder %v155, 0.0
    %v158 = vmul.f32 %v154, 0.2
    %v159 = vmul.f32 %v155, 0.2
    %v160 = vsel %vm156, %v154, %v158
    %v161 = vsel %vm157, %v155, %v159
    %v162 = vsel %vm73, %v160, -inf
    %163 = vmax.xlane.f32.xlu0 %v162
    %v164 = vpop.xlane.xlu0 %163
    %v165 = vsel %vm73, %v161, -inf
    %166 = vmax.xlane.f32.xlu0 %v165
    %v167 = vpop.xlane.xlu0 %166
    %v168 = vsub.f32 %v160, %v164
    %v169 = vsub.f32 %v161, %v167
    %v170 = vmul.f32 %v168, 1.442695
    %v171 = vpow.pop %v170
    %v172 = vmul.f32 %v169, 1.442695
    %v173 = vpow.pop %v172
    %176 = vrot.lane.b32.xlu0 %v42, 119
    %v177 = vpop.permute.xlu0 %176
    %178 = vrot.lane.b32.xlu0 %v43, 119
    %v179 = vpop.permute.xlu0 %178
    %v183 = vsel %vm73, %v171, 0
    %v186 = vsel %vm73, %v173, 0
    %188 = vmatpush.msra.mxu0 0.0
    %189 = vmatpush.msra.mxu0 0.0
    %190 = vmatpush.msra.mxu0 0.0
    %191 = vmatpush.msra.mxu0 0.0
    %192 = vmatpush.msra.mxu0 0.0
    %193 = vmatpush.msra.mxu0 0.0
    %194 = vmatpush.msra.mxu0 0.0
    %195 = vmatpush.msra.mxu0 0.0
    %196 = vmatpush.msra.mxu0 0.0
    %197 = vmatpush.msra.mxu0 0.0
    %198 = vmatpush.msra.mxu0 0.0
    %199 = vmatpush.msra.mxu0 0.0
    %200 = vmatpush.msra.mxu0 0.0
    %201 = vmatpush.msra.mxu0 0.0
    %202 = vmatpush.msra.mxu0 %v179
    %203 = vmatpush.msra.mxu0 %v177
    %204 = vmatmul.f32.gmra.mxu0 %v183
    %v205 = vpop.f32.mrf.mxu0
    %v206 = vadd.f32 0.0, %v205
    %207 = vmatmul.f32.gmra.mxu0 %v186
    %v208 = vpop.f32.mrf.mxu0
    %v209 = vadd.f32 0.0, %v208
    %210 = vdwg.mxu0
    %v211 = vrcp.pop %v206
    %v212 = vrcp.pop %v209
    %214 = vset.pattern.permute.xlu0 8
    %215 = vperm.xlu0 %214, %v211
    %v216 = vpop.permute.xlu0 %215
    %219 = vset.pattern.permute.xlu0 8
    %220 = vperm.xlu0 %219, %v212
    %v221 = vpop.permute.xlu0 %220
    %v223 = vmul.f32 %v206, %v216
    %v224 = vmul.f32 %v209, %v221
    %vm225 = vcmp.gt.f32.partialorder %v223, 0.0
    %vm226 = vcmp.gt.f32.partialorder %v224, 0.0
    %v227 = vmin.f32 %v223, 0.0
    %v228 = vmin.f32 %v224, 0.0
    %v229 = vmul.f32 %v227, 1.442695
    %v230 = vpow.pop %v229
    %v231 = vmul.f32 %v228, 1.442695
    %v232 = vpow.pop %v231
    %v233 = vsub.f32 %v230, 1.0
    %v234 = vsub.f32 %v232, 1.0
    %v235 = vsel %vm225, %v223, %v233
    %v236 = vsel %vm226, %v224, %v234
    %237 = vset.pattern.permute.xlu0 2
    %238 = vperm.xlu0 %237, %v39
    %v239 = vpop.permute.xlu0 %238
    %241 = vset.pattern.permute.xlu0 2
    %242 = vperm.xlu0 %241, %v40
    %v243 = vpop.permute.xlu0 %242
    %v245 = vperm.slane %v41, 2
    %v246 = vadd.f32 %v239, %v245
    %v247 = vadd.f32 %v243, %v245
    %s248 = sld [smem:[#allocation2 + $0x2]]
    %v249 = vstv %s248
    %v250 = vsel %vm63, %v246, %v249
    %v251 = vsel %vm64, %v247, %v249
    %vm252 = vcmp.gt.f32.partialorder %v250, 0.0
    %vm253 = vcmp.gt.f32.partialorder %v251, 0.0
    %v254 = vmul.f32 %v250, 0.2
    %v255 = vmul.f32 %v251, 0.2
    %v256 = vsel %vm252, %v250, %v254
    %v257 = vsel %vm253, %v251, %v255
    %v258 = vsel %vm73, %v256, -inf
    %259 = vmax.xlane.f32.xlu0 %v258
    %v260 = vpop.xlane.xlu0 %259
    %v261 = vsel %vm73, %v257, -inf
    %262 = vmax.xlane.f32.xlu0 %v261
    %v263 = vpop.xlane.xlu0 %262
    %v264 = vsub.f32 %v256, %v260
    %v265 = vsub.f32 %v257, %v263
    %v266 = vmul.f32 %v264, 1.442695
    %v267 = vpow.pop %v266
    %v268 = vmul.f32 %v265, 1.442695
    %v269 = vpow.pop %v268
    %270 = vrot.lane.b32.xlu0 %v42, 110
    %v271 = vpop.permute.xlu0 %270
    %272 = vrot.lane.b32.xlu0 %v43, 110
    %v273 = vpop.permute.xlu0 %272
    %v277 = vsel %vm73, %v267, 0
    %v280 = vsel %vm73, %v269, 0
    %282 = vmatpush.msra.mxu0 0.0
    %283 = vmatpush.msra.mxu0 0.0
    %284 = vmatpush.msra.mxu0 0.0
    %285 = vmatpush.msra.mxu0 0.0
    %286 = vmatpush.msra.mxu0 0.0
    %287 = vmatpush.msra.mxu0 0.0
    %288 = vmatpush.msra.mxu0 0.0
    %289 = vmatpush.msra.mxu0 0.0
    %290 = vmatpush.msra.mxu0 0.0
    %291 = vmatpush.msra.mxu0 0.0
    %292 = vmatpush.msra.mxu0 0.0
    %293 = vmatpush.msra.mxu0 0.0
    %294 = vmatpush.msra.mxu0 0.0
    %295 = vmatpush.msra.mxu0 0.0
    %296 = vmatpush.msra.mxu0 %v273
    %297 = vmatpush.msra.mxu0 %v271
    %298 = vmatmul.f32.gmra.mxu0 %v277
    %v299 = vpop.f32.mrf.mxu0
    %v300 = vadd.f32 0.0, %v299
    %301 = vmatmul.f32.gmra.mxu0 %v280
    %v302 = vpop.f32.mrf.mxu0
    %v303 = vadd.f32 0.0, %v302
    %304 = vdwg.mxu0
    %v305 = vrcp.pop %v300
    %v306 = vrcp.pop %v303
    %308 = vset.pattern.permute.xlu0 8
    %309 = vperm.xlu0 %308, %v305
    %v310 = vpop.permute.xlu0 %309
    %313 = vset.pattern.permute.xlu0 8
    %314 = vperm.xlu0 %313, %v306
    %v315 = vpop.permute.xlu0 %314
    %v317 = vmul.f32 %v300, %v310
    %v318 = vmul.f32 %v303, %v315
    %vm319 = vcmp.gt.f32.partialorder %v317, 0.0
    %vm320 = vcmp.gt.f32.partialorder %v318, 0.0
    %v321 = vmin.f32 %v317, 0.0
    %v322 = vmin.f32 %v318, 0.0
    %v323 = vmul.f32 %v321, 1.442695
    %v324 = vpow.pop %v323
    %v325 = vmul.f32 %v322, 1.442695
    %v326 = vpow.pop %v325
    %v327 = vsub.f32 %v324, 1.0
    %v328 = vsub.f32 %v326, 1.0
    %v329 = vsel %vm319, %v317, %v327
    %v330 = vsel %vm320, %v318, %v328
    %331 = vset.pattern.permute.xlu0 3
    %332 = vperm.xlu0 %331, %v39
    %v333 = vpop.permute.xlu0 %332
    %335 = vset.pattern.permute.xlu0 3
    %336 = vperm.xlu0 %335, %v40
    %v337 = vpop.permute.xlu0 %336
    %v339 = vperm.slane %v41, 3
    %v340 = vadd.f32 %v333, %v339
    %v341 = vadd.f32 %v337, %v339
    %s342 = sld [smem:[#allocation2 + $0x3]]
    %v343 = vstv %s342
    %v344 = vsel %vm63, %v340, %v343
    %v345 = vsel %vm64, %v341, %v343
    %vm346 = vcmp.gt.f32.partialorder %v344, 0.0
    %vm347 = vcmp.gt.f32.partialorder %v345, 0.0
    %v348 = vmul.f32 %v344, 0.2
    %v349 = vmul.f32 %v345, 0.2
    %v350 = vsel %vm346, %v344, %v348
    %v351 = vsel %vm347, %v345, %v349
    %v352 = vsel %vm73, %v350, -inf
    %353 = vmax.xlane.f32.xlu0 %v352
    %v354 = vpop.xlane.xlu0 %353
    %v355 = vsel %vm73, %v351, -inf
    %356 = vmax.xlane.f32.xlu0 %v355
    %v357 = vpop.xlane.xlu0 %356
    %v358 = vsub.f32 %v350, %v354
    %v359 = vsub.f32 %v351, %v357
    %v360 = vmul.f32 %v358, 1.442695
    %v361 = vpow.pop %v360
    %v362 = vmul.f32 %v359, 1.442695
    %v363 = vpow.pop %v362
    %364 = vrot.lane.b32.xlu0 %v42, 101
    %v365 = vpop.permute.xlu0 %364
    %366 = vrot.lane.b32.xlu0 %v43, 101
    %v367 = vpop.permute.xlu0 %366
    %v371 = vsel %vm73, %v361, 0
    %v374 = vsel %vm73, %v363, 0
    %376 = vmatpush.msra.mxu0 0.0
    %377 = vmatpush.msra.mxu0 0.0
    %378 = vmatpush.msra.mxu0 0.0
    %379 = vmatpush.msra.mxu0 0.0
    %380 = vmatpush.msra.mxu0 0.0
    %381 = vmatpush.msra.mxu0 0.0
    %382 = vmatpush.msra.mxu0 0.0
    %383 = vmatpush.msra.mxu0 0.0
    %384 = vmatpush.msra.mxu0 0.0
    %385 = vmatpush.msra.mxu0 0.0
    %386 = vmatpush.msra.mxu0 0.0
    %387 = vmatpush.msra.mxu0 0.0
    %388 = vmatpush.msra.mxu0 0.0
    %389 = vmatpush.msra.mxu0 0.0
    %390 = vmatpush.msra.mxu0 %v367
    %391 = vmatpush.msra.mxu0 %v365
    %392 = vmatmul.f32.gmra.mxu0 %v371
    %v393 = vpop.f32.mrf.mxu0
    %v394 = vadd.f32 0.0, %v393
    %395 = vmatmul.f32.gmra.mxu0 %v374
    %v396 = vpop.f32.mrf.mxu0
    %v397 = vadd.f32 0.0, %v396
    %398 = vdwg.mxu0
    %v399 = vrcp.pop %v394
    %v400 = vrcp.pop %v397
    %402 = vset.pattern.permute.xlu0 8
    %403 = vperm.xlu0 %402, %v399
    %v404 = vpop.permute.xlu0 %403
    %407 = vset.pattern.permute.xlu0 8
    %408 = vperm.xlu0 %407, %v400
    %v409 = vpop.permute.xlu0 %408
    %v411 = vmul.f32 %v394, %v404
    %v412 = vmul.f32 %v397, %v409
    %vm413 = vcmp.gt.f32.partialorder %v411, 0.0
    %vm414 = vcmp.gt.f32.partialorder %v412, 0.0
    %v415 = vmin.f32 %v411, 0.0
    %v416 = vmin.f32 %v412, 0.0
    %v417 = vmul.f32 %v415, 1.442695
    %v418 = vpow.pop %v417
    %v419 = vmul.f32 %v416, 1.442695
    %v420 = vpow.pop %v419
    %v421 = vsub.f32 %v418, 1.0
    %v422 = vsub.f32 %v420, 1.0
    %v423 = vsel %vm413, %v411, %v421
    %v424 = vsel %vm414, %v412, %v422
    %427 = vrot.lane.b32.xlu0 %v235, 8
    %v428 = vpop.permute.xlu0 %427
    %429 = vrot.lane.b32.xlu0 %v236, 8
    %v430 = vpop.permute.xlu0 %429
    %435 = vrot.lane.b32.xlu0 %v329, 16
    %v436 = vpop.permute.xlu0 %435
    %437 = vrot.lane.b32.xlu0 %v330, 16
    %v438 = vpop.permute.xlu0 %437
    %443 = vrot.lane.b32.xlu0 %v423, 24
    %v444 = vpop.permute.xlu0 %443
    %445 = vrot.lane.b32.xlu0 %v424, 24
    %v446 = vpop.permute.xlu0 %445
    %vm449 = vcmask 64512
    %v450 = vsel %vm449, %v139, %v428
    %v451 = vsel %vm449, %v140, %v430
    %v452 = vsel %vm73, %v450, %v436
    %v453 = vsel %vm73, %v451, %v438
    %vm454 = vcmask 195584
    %v455 = vsel %vm454, %v452, %v444
    %v456 = vsel %vm454, %v453, %v446
    %vm457 = vcmask 261120
    %458 = vst.msk [vmem:[%s5] sm:$0xff] %vm457, %v455
    %459 = vst.msk [vmem:[%s5 + $0x8] sm:$0xff] %vm457, %v456
    // Predicated region
    $region26: #{gat_forward.2} parent=1 // pred_check
      _
    $region27: #{gat_forward.2} parent=1 // pred_check_branch
      %461 = sbr.rel (0) target = $region29
    $region28: #{gat_forward.2} parent=1 // pred_region
      _
    $region29: #{gat_forward.2} parent=1 // pred_fallthru
      _
    // Predicated region
    $region30: #{gat_forward.2} parent=1 // pred_check
      _
    $region31: #{gat_forward.2} parent=1 // pred_check_branch
      %463 = sbr.rel (0) target = $region33
    $region32: #{gat_forward.2} parent=1 // pred_region
      _
    $region33: #{gat_forward.2} parent=1 // pred_fallthru
      _
    %464 = vsyncpa [#allocation3], 1

</llo_original>
